<compile_context>
chip_gen: v5e
topology: v5e:2x2
jax: 0.10.0
libtpu: 0.0.40
codegen_flags: <defaults>
</compile_context>

<pallas_src>
import jax
import jax.numpy as jnp
from jax import lax
from jax.experimental import pallas as pl
from jax.experimental.pallas import tpu as pltpu

# ---------------- small, module-consistent sizes ----------------
B = 2                       # batch
BPAD = 8                    # batch padded to one full sublane for MXU utilization
C, IMG = 3, 16              # image channels / spatial (stand-in for 3x224x224)
PATCH = 4
N = (IMG // PATCH) ** 2     # spatial feature locations (stand-in for 49)
PDIM = C * PATCH * PATCH    # flattened patch dim (48)
PDIM_PAD = 128              # padded to a full MXU lane tile
FEAT = 256                  # stand-in for 2048 resnet feature dim
HID = 128                   # stand-in for 512 GRU hidden dim
EMB = 128                   # stand-in for 512 embedding dim
VOCAB = 256                 # stand-in for tokenizer.vocab_size
TEXT_MAX_LEN = 8            # stand-in for 50
SOS_ID = 1                  # stand-in for special_tokens['<SOS>']
NEG_INF = -1e30             # safe: masked scores stay f32


# ------------------------------------------------------------------
# Feature extractor kernel (patch-embed matmul + bias + ReLU) fused with the
# per-image half of the additive attention (feats @ W_feat_attn + attn_b).
# ------------------------------------------------------------------
# TODO(synk): stand-in for ResNetModel.from_pretrained('microsoft/resnet-50');
# the pretrained 50-layer backbone is not reproduced -- a single Pallas
# patch-embedding matmul produces the (B, N, FEAT) grid the decoder consumes.
def _feature_kernel(patches_ref, w_ref, b_ref, w_af_ref, attn_b_ref,
                    feat_ref, fproj_ref):
    f = jnp.maximum(
        jnp.dot(patches_ref[...], w_ref[...],
                preferred_element_type=jnp.float32) + b_ref[...],
        0.0,
    )
    f_bf = f.astype(jnp.bfloat16)
    feat_ref[...] = f_bf                                           # (B*N, FEAT) bf16
    # hoisted feature-side attention projection (per-image work, not per-step)
    fproj_ref[...] = (jnp.dot(f_bf, w_af_ref[...],
                              preferred_element_type=jnp.float32)
                      + attn_b_ref[...])                           # (B*N, HID) f32


def extract_features(images, params):
    hp = IMG // PATCH
    patches = images.reshape(B, C, hp, PATCH, hp, PATCH)
    patches = patches.transpose(0, 2, 4, 1, 3, 5).reshape(B * N, PDIM)
    # zero-pad the contraction dim 48 -> 128 so the MXU lane dim is full
    patches_p = jnp.zeros((B * N, PDIM_PAD), jnp.float32).at[:, :PDIM].set(patches)
    w_feat_p = jnp.zeros((PDIM_PAD, FEAT), jnp.float32).at[:PDIM, :].set(params["w_feat"])
    feats, fproj = pl.pallas_call(
        _feature_kernel,
        out_shape=(jax.ShapeDtypeStruct((B * N, FEAT), jnp.bfloat16),
                   jax.ShapeDtypeStruct((B * N, HID), jnp.float32)),
        in_specs=[pl.BlockSpec(memory_space=pltpu.MemorySpace.VMEM)] * 5,
        out_specs=(pl.BlockSpec(memory_space=pltpu.MemorySpace.VMEM),
                   pl.BlockSpec(memory_space=pltpu.MemorySpace.VMEM)),
    )(patches_p, w_feat_p, params["b_feat"], params["w_af"], params["attn_b"])
    return feats.reshape(B, N, FEAT), fproj.reshape(B, N, HID)


# ------------------------------------------------------------------
# Fused greedy decoder: single kernel invocation, fully unrolled time loop.
# Additive attention (feature half precomputed upstream) + GRU cell (PyTorch
# gate order r, z, n) + vocab projection streamed to HBM + greedy argmax +
# embedding lookup, with hidden / previous-token-embedding carried as values.
# ------------------------------------------------------------------
def _decode_kernel(
    feats_ref,                                  # (BPAD*N, FEAT)  bf16
    fproj_ref,                                  # (BPAD*N, HID)   f32  (feats@W_af + b)
    v_w_ref,                                    # (1, HID)        f32
    w_h4_ref,                                   # (HID, 4*HID)    bf16  [W_attn_hid | W_hh]
    w_ie_ref, w_ic_ref,                         # (EMB,3H) / (FEAT,3H) bf16
    b_ih_ref, b_hh_ref,                         # (1, 3*HID)      f32
    w_p_ref, b_p_ref,                           # (HID, VOCAB) bf16 / (1, VOCAB) f32
    embed_ref,                                  # (VOCAB, EMB)    bf16
    inp0_ref,                                   # (BPAD, EMB)     bf16 = embed(<SOS>)
    logits_hbm,                                 # out: (T, BPAD, VOCAB) f32 in HBM (ANY)
    stage, sem,                                 # VMEM (2,BPAD,VOCAB) f32 + DMA sems (2,)
):
    T = logits_hbm.shape[0]

    # ---- loop-invariant loads / constants ----
    feats_bf = feats_ref[...]                                    # (BPAD*N, FEAT) bf16
    feat_proj = fproj_ref[...]                                   # (BPAD*N, HID)  f32

    # block-diagonal mask: flattened column c belongs to batch row c // N
    # (BPAD*N = 128 -> scores row / softmax / context-K all stay lane-aligned)
    col_b = lax.broadcasted_iota(jnp.int32, (BPAD, BPAD * N), 1) // N
    row_b = lax.broadcasted_iota(jnp.int32, (BPAD, BPAD * N), 0)
    blk_mask = col_b == row_b
    vocab_iota = lax.broadcasted_iota(jnp.int32, (BPAD, VOCAB), 1)

    v_w = v_w_ref[...]
    w_h4 = w_h4_ref[...]
    b_ih = b_ih_ref[...]
    b_hh = b_hh_ref[...]
    b_p = b_p_ref[...]
    embed_bf = embed_ref[...]

    hidden = jnp.zeros((BPAD, HID), jnp.float32)                 # hidden = zeros(1,B,512)
    inp = inp0_ref[...]                                          # embed(<SOS>), bf16

    # Fully unrolled time loop (T is a small static trip count): lets the
    # scheduler overlap step t's logits/argmax/embed tail with step t+1's
    # attention matmuls, and overlaps the logits DMA writeback with compute.
    for t in range(T):
        slot = t % 2

        # ---- one hidden-operand matmul: attn hidden-half + GRU gh fused ----
        h4 = jnp.dot(hidden.astype(jnp.bfloat16), w_h4,
                     preferred_element_type=jnp.float32)         # (BPAD, 4*HID)
        hid_proj = h4[:, :HID]                                   # 128-aligned slices
        gh = h4[:, HID:] + b_hh                                  # (BPAD, 3*HID)

        # ---- AdditiveAttention (feature half precomputed) ----
        hid_rep = jnp.broadcast_to(hid_proj[:, None, :],
                                   (BPAD, N, HID)).reshape(BPAD * N, HID)
        energy = jnp.tanh(feat_proj + hid_rep)                   # (BPAD*N, HID) f32
        scores = lax.dot_general(v_w, energy, (((1,), (1,)), ((), ())),
                                 preferred_element_type=jnp.float32)  # (1, BPAD*N)
        s_full = jnp.where(blk_mask, scores, NEG_INF)            # (BPAD, BPAD*N)
        m = jnp.max(s_full, axis=-1, keepdims=True)
        e = jnp.exp(s_full - m)
        w_attn = e * pl.reciprocal(jnp.sum(e, axis=-1, keepdims=True),
                                   approx=True)                  # block-diag softmax
        context = jnp.dot(w_attn.astype(jnp.bfloat16), feats_bf,
                          preferred_element_type=jnp.float32)    # (BPAD, FEAT)

        # ---- GRU cell (PyTorch gate order r, z, n); W_ih split -> no concat ----
        gi = (jnp.dot(inp, w_ie_ref[...], preferred_element_type=jnp.float32)
              + jnp.dot(context.astype(jnp.bfloat16), w_ic_ref[...],
                        preferred_element_type=jnp.float32)
              + b_ih)                                            # (BPAD, 3*HID)
        r = jax.nn.sigmoid(gi[:, :HID] + gh[:, :HID])
        z = jax.nn.sigmoid(gi[:, HID:2 * HID] + gh[:, HID:2 * HID])
        n_g = jnp.tanh(gi[:, 2 * HID:] + r * gh[:, 2 * HID:])
        h_new = (1.0 - z) * n_g + z * hidden                     # (BPAD, HID) f32

        # ---- projection to vocab + streamed HBM writeback (double-buffered) ----
        logits = jnp.dot(h_new.astype(jnp.bfloat16), w_p_ref[...],
                         preferred_element_type=jnp.float32) + b_p   # (BPAD, VOCAB)
        if t >= 2:   # reclaim this staging slot before overwriting it
            pltpu.make_async_copy(stage.at[slot], logits_hbm.at[t - 2],
                                  sem.at[slot]).wait()
        stage[slot] = logits
        pltpu.make_async_copy(stage.at[slot], logits_hbm.at[t],
                              sem.at[slot]).start()

        # ---- greedy argmax (first-max, torch semantics) + embedding lookup ----
        # TODO(synk): at production vocab sizes, tile VOCAB with a running argmax
        # and replace the one-hot matmul by an SMEM-indexed row gather / tiny DMA.
        if t + 1 < T:                                            # last lookup is dead
            maxv = jnp.max(logits, axis=-1, keepdims=True)
            idx = jnp.min(jnp.where(logits == maxv, vocab_iota, VOCAB),
                          axis=-1, keepdims=True)
            one_hot = (vocab_iota == idx).astype(jnp.bfloat16)
            inp = jnp.dot(one_hot, embed_bf)                     # (BPAD, EMB) bf16, exact
        hidden = h_new

    # drain the outstanding logits DMAs
    for t in range(max(0, T - 2), T):
        pltpu.make_async_copy(stage.at[t % 2], logits_hbm.at[t],
                              sem.at[t % 2]).wait()


def decode(features, fproj, params):
    T = TEXT_MAX_LEN - 1
    # pad batch rows to one full sublane (padded rows are sliced off below)
    feats_pad = (jnp.zeros((BPAD, N, FEAT), jnp.bfloat16)
                 .at[:B].set(features).reshape(BPAD * N, FEAT))
    fproj_pad = (jnp.zeros((BPAD, N, HID), jnp.float32)
                 .at[:B].set(fproj).reshape(BPAD * N, HID))
    # fuse the two hidden-operand weights into one matmul per step
    w_h4 = jnp.concatenate([params["w_ah"], params["w_hh"]], axis=1)  # (HID, 4*HID) bf16
    inp0 = jnp.broadcast_to(params["embed"][SOS_ID][None, :], (BPAD, EMB))  # bf16

    logits_seq = pl.pallas_call(
        _decode_kernel,
        out_shape=jax.ShapeDtypeStruct((T, BPAD, VOCAB), jnp.float32),
        in_specs=[pl.BlockSpec(memory_space=pltpu.MemorySpace.VMEM)] * 12,
        out_specs=pl.BlockSpec(memory_space=pl.ANY),   # logits live in HBM, streamed out
        scratch_shapes=[pltpu.VMEM((2, BPAD, VOCAB), jnp.float32),
                        pltpu.SemaphoreType.DMA((2,))],
    )(feats_pad, fproj_pad, params["v_w"], w_h4,
      params["w_ie"], params["w_ic"], params["b_ih"], params["b_hh"],
      params["w_p"], params["b_p"], params["embed"], inp0)
    # (T-1, BPAD, V) -> real batch -> (B, V, T-1)  (== torch cat(dim=1).permute(0,2,1))
    return jnp.transpose(logits_seq[:, :B, :], (1, 2, 0))


def caption_forward(images, params):
    features, fproj = extract_features(images, params)
    return decode(features, fproj, params)


def init_params(key):
    ks = jax.random.split(key, 14)
    s = 0.05
    f32, bf16 = jnp.float32, jnp.bfloat16
    p = {}
    p["w_feat"] = jax.random.normal(ks[0], (PDIM, FEAT), f32) * s
    p["b_feat"] = jax.random.normal(ks[1], (1, FEAT), f32) * s
    # attention Linear(FEAT+HID, HID) split into feature / hidden halves
    p["w_af"] = (jax.random.normal(ks[2], (FEAT, HID), f32) * s).astype(bf16)
    p["w_ah"] = (jax.random.normal(ks[3], (HID, HID), f32) * s).astype(bf16)
    p["attn_b"] = jax.random.normal(ks[4], (1, HID), f32) * s
    p["v_w"] = jax.random.normal(ks[5], (1, HID), f32) * s
    # GRU W_ih (EMB+FEAT, 3*HID) split into embedding / context halves
    p["w_ie"] = (jax.random.normal(ks[6], (EMB, 3 * HID), f32) * s).astype(bf16)
    p["w_ic"] = (jax.random.normal(ks[7], (FEAT, 3 * HID), f32) * s).astype(bf16)
    p["w_hh"] = (jax.random.normal(ks[8], (HID, 3 * HID), f32) * s).astype(bf16)
    p["b_ih"] = jax.random.normal(ks[9], (1, 3 * HID), f32) * s
    p["b_hh"] = jax.random.normal(ks[10], (1, 3 * HID), f32) * s
    p["w_p"] = (jax.random.normal(ks[11], (HID, VOCAB), f32) * s).astype(bf16)
    p["b_p"] = jax.random.normal(ks[12], (1, VOCAB), f32) * s
    p["embed"] = (jax.random.normal(ks[13], (VOCAB, EMB), f32) * s).astype(bf16)
    return p


if __name__ == "__main__":
    key = jax.random.PRNGKey(0)
    pkey, ikey = jax.random.split(key)
    params = init_params(pkey)
    images = jax.random.normal(ikey, (B, C, IMG, IMG), jnp.float32)

    out = caption_forward(images, params)
    out = jax.block_until_ready(out)
    assert out.shape == (B, VOCAB, TEXT_MAX_LEN - 1), out.shape
    assert jnp.all(jnp.isfinite(out))
    print("KERNEL_OK")
</pallas_src>

<mosaic_0001>
module attributes {stable_mosaic.version = 11 : i64} {
  func.func @_feature_kernel(%arg0: memref<32x128xf32, #tpu.memory_space<vmem>>, %arg1: memref<128x256xf32, #tpu.memory_space<vmem>>, %arg2: memref<1x256xf32, #tpu.memory_space<vmem>>, %arg3: memref<256x128xbf16, #tpu.memory_space<vmem>>, %arg4: memref<1x128xf32, #tpu.memory_space<vmem>>, %arg5: memref<32x256xbf16, #tpu.memory_space<vmem>>, %arg6: memref<32x128xf32, #tpu.memory_space<vmem>>) attributes {dimension_semantics = [], scalar_prefetch = 0 : i64, scratch_operands = 0 : i64, tpu.core_type = #tpu.core_type<tc>} {
    %c0 = arith.constant 0 : index
    %c0_0 = arith.constant 0 : index
    %0 = vector.load %arg0[%c0, %c0_0] : memref<32x128xf32, #tpu.memory_space<vmem>>, vector<32x128xf32>
    %c0_1 = arith.constant 0 : index
    %c0_2 = arith.constant 0 : index
    %1 = vector.load %arg1[%c0_1, %c0_2] : memref<128x256xf32, #tpu.memory_space<vmem>>, vector<128x256xf32>
    %cst = arith.constant dense<0.000000e+00> : vector<32x256xf32>
    %2 = tpu.matmul %0, %1, %cst {dimension_numbers = #tpu.dot_dimension_numbers<[1], [0], [0], [1], [0, 0, 1, 1], [], []>} : vector<32x128xf32>, vector<128x256xf32>, vector<32x256xf32> -> vector<32x256xf32>
    %c0_3 = arith.constant 0 : index
    %c0_4 = arith.constant 0 : index
    %3 = vector.load %arg2[%c0_3, %c0_4] : memref<1x256xf32, #tpu.memory_space<vmem>>, vector<1x256xf32>
    %4 = vector.broadcast %3 : vector<1x256xf32> to vector<32x256xf32>
    %5 = arith.addf %2, %4 : vector<32x256xf32>
    %cst_5 = arith.constant 0.000000e+00 : f32
    %6 = vector.broadcast %cst_5 : f32 to vector<32x256xf32>
    %7 = arith.maximumf %5, %6 : vector<32x256xf32>
    %8 = arith.truncf %7 : vector<32x256xf32> to vector<32x256xbf16>
    %c0_6 = arith.constant 0 : index
    %c0_7 = arith.constant 0 : index
    %9 = vector.load %arg5[%c0_6, %c0_7] : memref<32x256xbf16, #tpu.memory_space<vmem>>, vector<32x256xbf16>
    tpu.vector_store %arg5[%c0_6, %c0_7], %8 {strides = array<i32>} : memref<32x256xbf16, #tpu.memory_space<vmem>>, vector<32x256xbf16>,
    %c0_8 = arith.constant 0 : index
    %c0_9 = arith.constant 0 : index
    %10 = vector.load %arg3[%c0_8, %c0_9] : memref<256x128xbf16, #tpu.memory_space<vmem>>, vector<256x128xbf16>
    %cst_10 = arith.constant dense<0.000000e+00> : vector<32x128xf32>
    %11 = tpu.matmul %8, %10, %cst_10 {dimension_numbers = #tpu.dot_dimension_numbers<[1], [0], [0], [1], [0, 0, 1, 1], [], []>} : vector<32x256xbf16>, vector<256x128xbf16>, vector<32x128xf32> -> vector<32x128xf32>
    %c0_11 = arith.constant 0 : index
    %c0_12 = arith.constant 0 : index
    %12 = vector.load %arg4[%c0_11, %c0_12] : memref<1x128xf32, #tpu.memory_space<vmem>>, vector<1x128xf32>
    %13 = vector.broadcast %12 : vector<1x128xf32> to vector<32x128xf32>
    %14 = arith.addf %11, %13 : vector<32x128xf32>
    %c0_13 = arith.constant 0 : index
    %c0_14 = arith.constant 0 : index
    %15 = vector.load %arg6[%c0_13, %c0_14] : memref<32x128xf32, #tpu.memory_space<vmem>>, vector<32x128xf32>
    tpu.vector_store %arg6[%c0_13, %c0_14], %14 {strides = array<i32>} : memref<32x128xf32, #tpu.memory_space<vmem>>, vector<32x128xf32>,
    return
  }
}

</mosaic_0001>

<llo_original>
// kernel: tpu_custom_call.1
$region0: #{tpu_custom_call.1}
  #allocation0 [shape = 'u32[]', space=smem, size = 0x4, offset = 0x4, fixed_abs, tag = 'smem constant byte address 0x4 - core index']
  #allocation1 [shape = 'u32[72,128]{1,0:T(1,128)}', space=vmem, size = 0x9000, scoped, tag = 'internal scratch']
  %s0 = inlined_call_operand.hbm [shape: f32[32,128], index: 0, kind: input, shape index: {}]
  %s1 = inlined_call_operand.hbm [shape: f32[128,256], index: 1, kind: input, shape index: {}]
  %s2 = inlined_call_operand.hbm [shape: f32[1,256], index: 2, kind: input, shape index: {}]
  %s3 = inlined_call_operand.hbm [shape: bf16[256,128], index: 3, kind: input, shape index: {}]
  %s4 = inlined_call_operand.vmem [shape: f32[1,128], index: 4, kind: input, shape index: {}]
  %s5 = inlined_call_operand.hbm [shape: bf16[32,256], index: 5, kind: output, shape index: {0}]
  %s6 = inlined_call_operand.hbm [shape: f32[32,128], index: 6, kind: output, shape index: {1}]
  %7 = xla_tuple %s5, %s6
  %s8 = sld [smem:[#allocation0]]
  $region54: #{tpu_custom_call.1} parent=0
    _
  %s10 = ssub.s32 1, %s8
  %s11 = scalar_select 0, %s10, %s8
  $region1: #{tpu_custom_call.1} parent=0
    #allocation2 [shape = 'u8[16384]{0}', space=vmem, size = 0x4000, scoped, tag = 'input window, operand 0, single buffered']
    #allocation3 [shape = 's32[1]{0}', space=sflag, size = 0x4, scoped, tag = 'scoped memory for tpu_custom_call.1']
    #allocation4 [shape = 's32[1]{0}', space=sflag, size = 0x4, scoped, tag = 'scoped memory for tpu_custom_call.1']
    #allocation5 [shape = 'u8[131072]{0}', space=vmem, size = 0x20000, scoped, tag = 'input window, operand 1, single buffered']
    #allocation6 [shape = 's32[1]{0}', space=sflag, size = 0x4, scoped, tag = 'scoped memory for tpu_custom_call.1']
    #allocation7 [shape = 'u8[1024]{0}', space=vmem, size = 0x400, scoped, tag = 'input window, operand 2, single buffered']
    #allocation8 [shape = 'u8[65536]{0}', space=vmem, size = 0x10000, scoped, tag = 'input window, operand 3, single buffered']
    #allocation9 [shape = 's32[1]{0}', space=sflag, size = 0x4, scoped, tag = 'scoped memory for tpu_custom_call.1']
    #allocation10 [shape = 'u8[16384]{0}', space=vmem, size = 0x4000, scoped, tag = 'output window, operand 0, single buffered']
    #allocation11 [shape = 'u8[16384]{0}', space=vmem, size = 0x4000, scoped, tag = 'output window, operand 1, single buffered']
    #allocation12 [shape = 's32[1]{0}', space=sflag, size = 0x4, scoped, tag = 'scoped memory for tpu_custom_call.1']
    %12 = vsyncpa [#allocation3], 0
    %13 = vsyncpa [#allocation6], 0
    %14 = vsyncpa [#allocation9], 0
    %15 = vsyncpa [#allocation4], 0
    %16 = vsyncpa [#allocation12], 0
    // Predicated region
    $region2: #{tpu_custom_call.1} parent=1 // pred_check
      _
    $region3: #{tpu_custom_call.1} parent=1 // pred_check_branch
      %18 = sbr.rel (0) target = $region5
    $region4: #{tpu_custom_call.1} parent=1 // pred_region
      %20 = vsyncadd [#allocation3], 0
      %s21 = sshll.u32 %s0, 4
      %s22 = int_to_ptr.hbm [resolvable:$true] %s21
      %s23 = sshll.u32 [#allocation2], 4
      %s24 = int_to_ptr.vmem [resolvable:$true] %s23
      %29 = dma.hbm_to_vmem [thread:$0]  %s22, 512, %s24, [#allocation3], 128, 128, 8
    $region5: #{tpu_custom_call.1} parent=1 // pred_fallthru
      _
    // Predicated region
    $region6: #{tpu_custom_call.1} parent=1 // pred_check
      _
    $region7: #{tpu_custom_call.1} parent=1 // pred_check_branch
      %31 = sbr.rel (0) target = $region9
    $region8: #{tpu_custom_call.1} parent=1 // pred_region
      %33 = vsyncadd [#allocation6], 0
      %s34 = sshll.u32 %s1, 4
      %s35 = int_to_ptr.hbm [resolvable:$true] %s34
      %s36 = sshll.u32 [#allocation5], 4
      %s37 = int_to_ptr.vmem [resolvable:$true] %s36
      %42 = dma.hbm_to_vmem [thread:$0]  %s35, 4096, %s37, [#allocation6], 256, 256, 16
    $region9: #{tpu_custom_call.1} parent=1 // pred_fallthru
      _
    // Predicated region
    $region10: #{tpu_custom_call.1} parent=1 // pred_check
      _
    $region11: #{tpu_custom_call.1} parent=1 // pred_check_branch
      %44 = sbr.rel (0) target = $region13
    $region12: #{tpu_custom_call.1} parent=1 // pred_region
      %46 = vsyncadd [#allocation6], 0
      %s48 = sshll.u32 %s2, 4
      %s49 = int_to_ptr.hbm [resolvable:$true] %s48
      %s50 = sshll.u32 [#allocation7], 4
      %s51 = int_to_ptr.vmem [resolvable:$true] %s50
      %53 = dma.hbm_to_vmem [thread:$0]  %s49, 32, %s51, [#allocation6]
    $region13: #{tpu_custom_call.1} parent=1 // pred_fallthru
      _
    // Predicated region
    $region14: #{tpu_custom_call.1} parent=1 // pred_check
      _
    $region15: #{tpu_custom_call.1} parent=1 // pred_check_branch
      %55 = sbr.rel (0) target = $region17
    $region16: #{tpu_custom_call.1} parent=1 // pred_region
      %57 = vsyncadd [#allocation9], 0
      %s58 = sshll.u32 %s3, 4
      %s59 = int_to_ptr.hbm [resolvable:$true] %s58
      %s60 = sshll.u32 [#allocation8], 4
      %s61 = int_to_ptr.vmem [resolvable:$true] %s60
      %66 = dma.hbm_to_vmem [thread:$0]  %s59, 2048, %s61, [#allocation9], 64, 64, 4
    $region17: #{tpu_custom_call.1} parent=1 // pred_fallthru
      _
    // Predicated region
    $region18: #{tpu_custom_call.1} parent=1 // pred_check
      _
    $region19: #{tpu_custom_call.1} parent=1 // pred_check_branch
      %68 = sbr.rel (0) target = $region21
    $region20: #{tpu_custom_call.1} parent=1 // pred_region
      _
    $region21: #{tpu_custom_call.1} parent=1 // pred_fallthru
      _
    // Predicated region
    $region22: #{tpu_custom_call.1} parent=1 // pred_check
      _
    $region23: #{tpu_custom_call.1} parent=1 // pred_check_branch
      %70 = sbr.rel (0) target = $region25
    $region24: #{tpu_custom_call.1} parent=1 // pred_region
      %72 = dma.done [#allocation3], 512
    $region25: #{tpu_custom_call.1} parent=1 // pred_fallthru
      _
    // Predicated region
    $region26: #{tpu_custom_call.1} parent=1 // pred_check
      _
    $region27: #{tpu_custom_call.1} parent=1 // pred_check_branch
      %74 = sbr.rel (0) target = $region29
    $region28: #{tpu_custom_call.1} parent=1 // pred_region
      %76 = dma.done [#allocation6], 4096
    $region29: #{tpu_custom_call.1} parent=1 // pred_fallthru
      _
    // Predicated region
    $region30: #{tpu_custom_call.1} parent=1 // pred_check
      _
    $region31: #{tpu_custom_call.1} parent=1 // pred_check_branch
      %78 = sbr.rel (0) target = $region33
    $region32: #{tpu_custom_call.1} parent=1 // pred_region
      %80 = dma.done [#allocation6], 32
    $region33: #{tpu_custom_call.1} parent=1 // pred_fallthru
      _
    // Predicated region
    $region34: #{tpu_custom_call.1} parent=1 // pred_check
      _
    $region35: #{tpu_custom_call.1} parent=1 // pred_check_branch
      %82 = sbr.rel (0) target = $region37
    $region36: #{tpu_custom_call.1} parent=1 // pred_region
      %84 = dma.done [#allocation9], 2048
    $region37: #{tpu_custom_call.1} parent=1 // pred_fallthru
      _
    %v85 = vld [vmem:[#allocation2] sm:$0xff]
    %v86 = vld [vmem:[#allocation2 + $0x8] sm:$0xff]
    %v87 = vld [vmem:[#allocation2 + $0x10] sm:$0xff]
    %v88 = vld [vmem:[#allocation2 + $0x18] sm:$0xff]
    %v89 = vld [vmem:[#allocation5] sm:$0xff]
    %v90 = vld [vmem:[#allocation5 + $0x8] sm:$0xff]
    %v91 = vld [vmem:[#allocation5 + $0x10] sm:$0xff]
    %v92 = vld [vmem:[#allocation5 + $0x18] sm:$0xff]
    %v93 = vld [vmem:[#allocation5 + $0x20] sm:$0xff]
    %v94 = vld [vmem:[#allocation5 + $0x28] sm:$0xff]
    %v95 = vld [vmem:[#allocation5 + $0x30] sm:$0xff]
    %v96 = vld [vmem:[#allocation5 + $0x38] sm:$0xff]
    %v97 = vld [vmem:[#allocation5 + $0x40] sm:$0xff]
    %v98 = vld [vmem:[#allocation5 + $0x48] sm:$0xff]
    %v99 = vld [vmem:[#allocation5 + $0x50] sm:$0xff]
    %v100 = vld [vmem:[#allocation5 + $0x58] sm:$0xff]
    %v101 = vld [vmem:[#allocation5 + $0x60] sm:$0xff]
    %v102 = vld [vmem:[#allocation5 + $0x68] sm:$0xff]
    %v103 = vld [vmem:[#allocation5 + $0x70] sm:$0xff]
    %v104 = vld [vmem:[#allocation5 + $0x78] sm:$0xff]
    %v105 = vld [vmem:[#allocation5 + $0x80] sm:$0xff]
    %v106 = vld [vmem:[#allocation5 + $0x88] sm:$0xff]
    %v107 = vld [vmem:[#allocation5 + $0x90] sm:$0xff]
    %v108 = vld [vmem:[#allocation5 + $0x98] sm:$0xff]
    %v109 = vld [vmem:[#allocation5 + $0xa0] sm:$0xff]
    %v110 = vld [vmem:[#allocation5 + $0xa8] sm:$0xff]
    %v111 = vld [vmem:[#allocation5 + $0xb0] sm:$0xff]
    %v112 = vld [vmem:[#allocation5 + $0xb8] sm:$0xff]
    %v113 = vld [vmem:[#allocation5 + $0xc0] sm:$0xff]
    %v114 = vld [vmem:[#allocation5 + $0xc8] sm:$0xff]
    %v115 = vld [vmem:[#allocation5 + $0xd0] sm:$0xff]
    %v116 = vld [vmem:[#allocation5 + $0xd8] sm:$0xff]
    %v117 = vld [vmem:[#allocation5 + $0xe0] sm:$0xff]
    %v118 = vld [vmem:[#allocation5 + $0xe8] sm:$0xff]
    %v119 = vld [vmem:[#allocation5 + $0xf0] sm:$0xff]
    %v120 = vld [vmem:[#allocation5 + $0xf8] sm:$0xff]
    %v121 = vld [vmem:[#allocation7] sm:$0x3]
    %v123 = vperm.slane %v121, 0
    %v124 = vperm.slane %v121, 1
    %127 = vmatpush.msra.mxu0 %v119
    %128 = vmatpush.msra.mxu0 %v117
    %129 = vmatpush.msra.mxu0 %v115
    %130 = vmatpush.msra.mxu0 %v113
    %131 = vmatpush.msra.mxu0 %v111
    %132 = vmatpush.msra.mxu0 %v109
    %133 = vmatpush.msra.mxu0 %v107
    %134 = vmatpush.msra.mxu0 %v105
    %135 = vmatpush.msra.mxu0 %v103
    %136 = vmatpush.msra.mxu0 %v101
    %137 = vmatpush.msra.mxu0 %v99
    %138 = vmatpush.msra.mxu0 %v97
    %139 = vmatpush.msra.mxu0 %v95
    %140 = vmatpush.msra.mxu0 %v93
    %141 = vmatpush.msra.mxu0 %v91
    %142 = vmatpush.msra.mxu0 %v89
    %143 = vmatmul.f32.gmra.mxu0 %v85
    %v144 = vpop.f32.mrf.mxu0
    %v145 = vadd.f32 %v123, %v144
    %146 = vmatmul.f32.gmra.mxu0 %v86
    %v147 = vpop.f32.mrf.mxu0
    %v148 = vadd.f32 %v123, %v147
    %149 = vmatmul.f32.gmra.mxu0 %v87
    %v150 = vpop.f32.mrf.mxu0
    %v151 = vadd.f32 %v123, %v150
    %152 = vmatmul.f32.gmra.mxu0 %v88
    %v153 = vpop.f32.mrf.mxu0
    %v154 = vadd.f32 %v123, %v153
    %155 = vdwg.mxu0
    %156 = vmatpush.msra.mxu0 %v120
    %157 = vmatpush.msra.mxu0 %v118
    %158 = vmatpush.msra.mxu0 %v116
    %159 = vmatpush.msra.mxu0 %v114
    %160 = vmatpush.msra.mxu0 %v112
    %161 = vmatpush.msra.mxu0 %v110
    %162 = vmatpush.msra.mxu0 %v108
    %163 = vmatpush.msra.mxu0 %v106
    %164 = vmatpush.msra.mxu0 %v104
    %165 = vmatpush.msra.mxu0 %v102
    %166 = vmatpush.msra.mxu0 %v100
    %167 = vmatpush.msra.mxu0 %v98
    %168 = vmatpush.msra.mxu0 %v96
    %169 = vmatpush.msra.mxu0 %v94
    %170 = vmatpush.msra.mxu0 %v92
    %171 = vmatpush.msra.mxu0 %v90
    %172 = vmatmul.f32.gmra.mxu0 %v85
    %v173 = vpop.f32.mrf.mxu0
    %v174 = vadd.f32 %v124, %v173
    %175 = vmatmul.f32.gmra.mxu0 %v86
    %v176 = vpop.f32.mrf.mxu0
    %v177 = vadd.f32 %v124, %v176
    %178 = vmatmul.f32.gmra.mxu0 %v87
    %v179 = vpop.f32.mrf.mxu0
    %v180 = vadd.f32 %v124, %v179
    %181 = vmatmul.f32.gmra.mxu0 %v88
    %v182 = vpop.f32.mrf.mxu0
    %v183 = vadd.f32 %v124, %v182
    %184 = vdwg.mxu0
    %v185 = vmax.f32 %v145, 0.0
    %v186 = vmax.f32 %v174, 0.0
    %v187 = vmax.f32 %v148, 0.0
    %v188 = vmax.f32 %v177, 0.0
    %v189 = vmax.f32 %v151, 0.0
    %v190 = vmax.f32 %v180, 0.0
    %v191 = vmax.f32 %v154, 0.0
    %v192 = vmax.f32 %v183, 0.0
    %v193 = vpack.c.bf16 %v186, %v185
    %v194 = vpack.c.bf16 %v188, %v187
    %v195 = vpack.c.bf16 %v190, %v189
    %v196 = vpack.c.bf16 %v192, %v191
    %197 = vst [vmem:[#allocation10] sm:$0xff] %v193
    %198 = vst [vmem:[#allocation10 + $0x8] sm:$0xff] %v194
    %199 = vst [vmem:[#allocation10 + $0x10] sm:$0xff] %v195
    %200 = vst [vmem:[#allocation10 + $0x18] sm:$0xff] %v196
    %v201 = vld [vmem:[#allocation8] sm:$0xf]
    %v202 = vld [vmem:[#allocation8 + $0x4] sm:$0xf]
    %v203 = vld [vmem:[#allocation8 + $0x8] sm:$0xf]
    %v204 = vld [vmem:[#allocation8 + $0xc] sm:$0xf]
    %v205 = vld [vmem:[#allocation8 + $0x10] sm:$0xf]
    %v206 = vld [vmem:[#allocation8 + $0x14] sm:$0xf]
    %v207 = vld [vmem:[#allocation8 + $0x18] sm:$0xf]
    %v208 = vld [vmem:[#allocation8 + $0x1c] sm:$0xf]
    %v209 = vld [vmem:[#allocation8 + $0x20] sm:$0xf]
    %v210 = vld [vmem:[#allocation8 + $0x24] sm:$0xf]
    %v211 = vld [vmem:[#allocation8 + $0x28] sm:$0xf]
    %v212 = vld [vmem:[#allocation8 + $0x2c] sm:$0xf]
    %v213 = vld [vmem:[#allocation8 + $0x30] sm:$0xf]
    %v214 = vld [vmem:[#allocation8 + $0x34] sm:$0xf]
    %v215 = vld [vmem:[#allocation8 + $0x38] sm:$0xf]
    %v216 = vld [vmem:[#allocation8 + $0x3c] sm:$0xf]
    %v217 = vld [vmem:[#allocation8 + $0x40] sm:$0xf]
    %v218 = vld [vmem:[#allocation8 + $0x44] sm:$0xf]
    %v219 = vld [vmem:[#allocation8 + $0x48] sm:$0xf]
    %v220 = vld [vmem:[#allocation8 + $0x4c] sm:$0xf]
    %v221 = vld [vmem:[#allocation8 + $0x50] sm:$0xf]
    %v222 = vld [vmem:[#allocation8 + $0x54] sm:$0xf]
    %v223 = vld [vmem:[#allocation8 + $0x58] sm:$0xf]
    %v224 = vld [vmem:[#allocation8 + $0x5c] sm:$0xf]
    %v225 = vld [vmem:[#allocation8 + $0x60] sm:$0xf]
    %v226 = vld [vmem:[#allocation8 + $0x64] sm:$0xf]
    %v227 = vld [vmem:[#allocation8 + $0x68] sm:$0xf]
    %v228 = vld [vmem:[#allocation8 + $0x6c] sm:$0xf]
    %v229 = vld [vmem:[#allocation8 + $0x70] sm:$0xf]
    %v230 = vld [vmem:[#allocation8 + $0x74] sm:$0xf]
    %v231 = vld [vmem:[#allocation8 + $0x78] sm:$0xf]
    %v232 = vld [vmem:[#allocation8 + $0x7c] sm:$0xf]
    %v233 = vld [vmem:[%s4] sm:$0x1]
    %v235 = vperm.slane %v233, 0
    %v241 = vunpack.c.l.b16 %v193
    %v242 = vunpack.c.h.b16 %v193
    %v243 = vunpack.c.l.b16 %v194
    %v244 = vunpack.c.h.b16 %v194
    %v245 = vunpack.c.l.b16 %v195
    %v246 = vunpack.c.h.b16 %v195
    %v247 = vunpack.c.l.b16 %v196
    %v248 = vunpack.c.h.b16 %v196
    %v249 = vpack.c.b16 %v243, %v241
    %v250 = vpack.c.b16 %v244, %v242
    %v251 = vpack.c.b16 %v247, %v245
    %v252 = vpack.c.b16 %v248, %v246
    %v289 = vunpack.c.l.b16 %v201
    %v290 = vunpack.c.l.b16 %v202
    %v291 = vunpack.c.l.b16 %v203
    %v292 = vunpack.c.l.b16 %v204
    %v293 = vunpack.c.l.b16 %v205
    %v294 = vunpack.c.l.b16 %v206
    %v295 = vunpack.c.l.b16 %v207
    %v296 = vunpack.c.l.b16 %v208
    %v297 = vunpack.c.l.b16 %v209
    %v298 = vunpack.c.l.b16 %v210
    %v299 = vunpack.c.l.b16 %v211
    %v300 = vunpack.c.l.b16 %v212
    %v301 = vunpack.c.l.b16 %v213
    %v302 = vunpack.c.l.b16 %v214
    %v303 = vunpack.c.l.b16 %v215
    %v304 = vunpack.c.l.b16 %v216
    %v305 = vunpack.c.l.b16 %v217
    %v306 = vunpack.c.l.b16 %v218
    %v307 = vunpack.c.l.b16 %v219
    %v308 = vunpack.c.l.b16 %v220
    %v309 = vunpack.c.l.b16 %v221
    %v310 = vunpack.c.l.b16 %v222
    %v311 = vunpack.c.l.b16 %v223
    %v312 = vunpack.c.l.b16 %v224
    %v313 = vunpack.c.l.b16 %v225
    %v314 = vunpack.c.l.b16 %v226
    %v315 = vunpack.c.l.b16 %v227
    %v316 = vunpack.c.l.b16 %v228
    %v317 = vunpack.c.l.b16 %v229
    %v318 = vunpack.c.l.b16 %v230
    %v319 = vunpack.c.l.b16 %v231
    %v320 = vunpack.c.l.b16 %v232
    %v321 = vpack.c.b16 %v290, %v289
    %v322 = vpack.c.b16 %v292, %v291
    %v323 = vpack.c.b16 %v294, %v293
    %v324 = vpack.c.b16 %v296, %v295
    %v325 = vpack.c.b16 %v298, %v297
    %v326 = vpack.c.b16 %v300, %v299
    %v327 = vpack.c.b16 %v302, %v301
    %v328 = vpack.c.b16 %v304, %v303
    %v329 = vpack.c.b16 %v306, %v305
    %v330 = vpack.c.b16 %v308, %v307
    %v331 = vpack.c.b16 %v310, %v309
    %v332 = vpack.c.b16 %v312, %v311
    %v333 = vpack.c.b16 %v314, %v313
    %v334 = vpack.c.b16 %v316, %v315
    %v335 = vpack.c.b16 %v318, %v317
    %v336 = vpack.c.b16 %v320, %v319
    %353 = vmatpush.bf16.msra.mxu0 %v328
    %354 = vmatpush.bf16.msra.mxu0 %v327
    %355 = vmatpush.bf16.msra.mxu0 %v326
    %356 = vmatpush.bf16.msra.mxu0 %v325
    %357 = vmatpush.bf16.msra.mxu0 %v324
    %358 = vmatpush.bf16.msra.mxu0 %v323
    %359 = vmatpush.bf16.msra.mxu0 %v322
    %360 = vmatpush.bf16.msra.mxu0 %v321
    %361 = vmatmul.bf16.gmra.mxu0 %v249
    %v362 = vpop.f32.mrf.mxu0
    %v363 = vadd.f32 %v235, %v362
    %v364 = vpop.f32.mrf.mxu0
    %v365 = vadd.f32 %v235, %v364
    %366 = vmatmul.bf16.gmra.mxu0 %v251
    %v367 = vpop.f32.mrf.mxu0
    %v368 = vadd.f32 %v235, %v367
    %v369 = vpop.f32.mrf.mxu0
    %v370 = vadd.f32 %v235, %v369
    %371 = vdwg.mxu0
    %372 = vmatpush.bf16.msra.mxu0 %v336
    %373 = vmatpush.bf16.msra.mxu0 %v335
    %374 = vmatpush.bf16.msra.mxu0 %v334
    %375 = vmatpush.bf16.msra.mxu0 %v333
    %376 = vmatpush.bf16.msra.mxu0 %v332
    %377 = vmatpush.bf16.msra.mxu0 %v331
    %378 = vmatpush.bf16.msra.mxu0 %v330
    %379 = vmatpush.bf16.msra.mxu0 %v329
    %380 = vmatmul.bf16.gmra.mxu0 %v250
    %v381 = vpop.f32.mrf.mxu0
    %v382 = vadd.f32 %v363, %v381
    %v383 = vpop.f32.mrf.mxu0
    %v384 = vadd.f32 %v365, %v383
    %385 = vmatmul.bf16.gmra.mxu0 %v252
    %v386 = vpop.f32.mrf.mxu0
    %v387 = vadd.f32 %v368, %v386
    %v388 = vpop.f32.mrf.mxu0
    %v389 = vadd.f32 %v370, %v388
    %390 = vdwg.mxu0
    %391 = vst [vmem:[#allocation11] sm:$0xff] %v382
    %392 = vst [vmem:[#allocation11 + $0x8] sm:$0xff] %v384
    %393 = vst [vmem:[#allocation11 + $0x10] sm:$0xff] %v387
    %394 = vst [vmem:[#allocation11 + $0x18] sm:$0xff] %v389
    // Predicated region
    $region38: #{tpu_custom_call.1} parent=1 // pred_check
      _
    $region39: #{tpu_custom_call.1} parent=1 // pred_check_branch
      %396 = sbr.rel (0) target = $region41
    $region40: #{tpu_custom_call.1} parent=1 // pred_region
      %398 = vsyncadd [#allocation4], 0
      %s399 = sshll.u32 [#allocation10], 4
      %s400 = int_to_ptr.vmem [resolvable:$true] %s399
      %s401 = sshll.u32 %s5, 4
      %s402 = int_to_ptr.hbm [resolvable:$true] %s401
      %407 = dma.vmem_to_hbm [thread:$0]  %s400, 512, %s402, [#allocation4], 128, 128, 8
    $region41: #{tpu_custom_call.1} parent=1 // pred_fallthru
      _
    // Predicated region
    $region42: #{tpu_custom_call.1} parent=1 // pred_check
      _
    $region43: #{tpu_custom_call.1} parent=1 // pred_check_branch
      %409 = sbr.rel (0) target = $region45
    $region44: #{tpu_custom_call.1} parent=1 // pred_region
      %411 = vsyncadd [#allocation12], 0
      %s412 = sshll.u32 [#allocation11], 4
      %s413 = int_to_ptr.vmem [resolvable:$true] %s412
      %s414 = sshll.u32 %s6, 4
      %s415 = int_to_ptr.hbm [resolvable:$true] %s414
      %420 = dma.vmem_to_hbm [thread:$0]  %s413, 512, %s415, [#allocation12], 128, 128, 8
    $region45: #{tpu_custom_call.1} parent=1 // pred_fallthru
      _
    // Predicated region
    $region46: #{tpu_custom_call.1} parent=1 // pred_check
      _
    $region47: #{tpu_custom_call.1} parent=1 // pred_check_branch
      %422 = sbr.rel (0) target = $region49
    $region48: #{tpu_custom_call.1} parent=1 // pred_region
      %424 = dma.done [#allocation4], 512
    $region49: #{tpu_custom_call.1} parent=1 // pred_fallthru
      _
    // Predicated region
    $region50: #{tpu_custom_call.1} parent=1 // pred_check
      _
    $region51: #{tpu_custom_call.1} parent=1 // pred_check_branch
      %426 = sbr.rel (0) target = $region53
    $region52: #{tpu_custom_call.1} parent=1 // pred_region
      %428 = dma.done [#allocation12], 512
    $region53: #{tpu_custom_call.1} parent=1 // pred_fallthru
      _
    %429 = vsyncpa [#allocation3], 1
    %430 = vsyncpa [#allocation6], 1
    %431 = vsyncpa [#allocation9], 1
    %432 = vsyncpa [#allocation4], 1
    %433 = vsyncpa [#allocation12], 1

</llo_original>
